<compile_context>
chip_gen: v6e
topology: v6e:2x2x1
jax: 0.10.0
libtpu: 0.0.40
codegen_flags: <defaults>
</compile_context>

<pallas_src>
import functools
import math

import jax
import jax.numpy as jnp
from jax.experimental import pallas as pl
from jax.experimental.pallas import tpu as pltpu


# ---------------------------------------------------------------------------
# Block-size selection helpers
# ---------------------------------------------------------------------------
def _largest_divisor_leq(n, target):
    for d in range(min(n, max(target, 1)), 0, -1):
        if n % d == 0:
            return d
    return 1


def _choose_q_tile(l_q, target):
    """Largest divisor of l_q that is <= target and a multiple of 8 (or l_q itself)."""
    if l_q <= target:
        return l_q
    for t in range(min(l_q, target), 7, -1):
        if l_q % t == 0 and t % 8 == 0:
            return t
    return l_q  # no legal tile -> keep the full query axis


def _choose_blocks(bh, l_q, l_k, d, in_itemsize, out_itemsize,
                   max_heads=8, max_q=256, budget_bytes=24 * 1024 * 1024):
    """Pick (head-block, query-tile) so the per-step live set fits the VMEM budget."""
    def estimate(g, tq):
        kv = 2 * 2 * g * l_k * d * in_itemsize                        # K, V (double-buffered)
        qio = 2 * g * tq * (d * in_itemsize + d * out_itemsize + 4)   # Q, out, sel (dbl-buf)
        inter = 4 * g * tq * l_k * 4                                  # f32 score-sized temps
        return kv + qio + inter

    g = _largest_divisor_leq(bh, min(max_heads, max(1, bh // 2)))     # keep grid >= 2 steps
    tq = _choose_q_tile(l_q, max_q)
    while estimate(g, tq) > budget_bytes:
        if g > 1:
            g = _largest_divisor_leq(bh, g // 2)
        else:
            new_tq = _choose_q_tile(l_q, max(8, tq // 2))
            if new_tq >= tq:
                break
            tq = new_tq
    return g, tq


# ---------------------------------------------------------------------------
# Fused ProbAttention kernel: grid = (head-blocks, query-tiles).
# ---------------------------------------------------------------------------
def _prob_attention_kernel(q_ref, k_ref, v_ref, sel_ref, o_ref, *,
                           scale, mask_flag, q_tile):
    qi = pl.program_id(1)

    # Scale folded into Q (small [G,tq,D] pass), bf16 MXU operands, f32 accumulation.
    q = (q_ref[...].astype(jnp.float32) * scale).astype(jnp.bfloat16)   # [G, tq, D]
    k = k_ref[...].astype(jnp.bfloat16)                                  # [G, Lk, D]
    sel = sel_ref[...]                                                   # [G, tq, 1] f32 {0,1}

    s = jnp.einsum('gld,gkd->glk', q, k,
                   preferred_element_type=jnp.float32)                   # [G, tq, Lk] f32

    tq, l_k = s.shape[1], s.shape[2]

    if mask_flag:
        # ProbMask == causal mask at the (global) query position.
        row = jax.lax.broadcasted_iota(jnp.int32, (tq, l_k), 0) + qi * q_tile
        col = jax.lax.broadcasted_iota(jnp.int32, (tq, l_k), 1)
        causal = col <= row                                              # [tq, Lk]
        s = jnp.where(causal[None], s, jnp.float32(-1e30))

    # Row-wise softmax (diagonal always unmasked, so every row has a finite max).
    s = s - jnp.max(s, axis=-1, keepdims=True)
    p = jnp.exp(s)
    attn = p * pl.reciprocal(jnp.sum(p, axis=-1, keepdims=True), approx=True)

    # Blend the WEIGHTS (not the outputs): selected rows -> softmax attention,
    # other rows -> cumsum(V) weights (causal 0/1) or mean(V) weights (1/Lk).
    if mask_flag:
        base_w = causal.astype(jnp.float32)[None]                        # [1, tq, Lk]
    else:
        base_w = jnp.float32(1.0 / l_k)
    w = jnp.where(sel > 0.0, attn, base_w).astype(jnp.bfloat16)          # [G, tq, Lk]

    v = v_ref[...].astype(jnp.bfloat16)                                  # [G, Lk, D]
    out = jnp.einsum('glk,gkd->gld', w, v,
                     preferred_element_type=jnp.float32)                 # single PV matmul
    o_ref[...] = out.astype(o_ref.dtype)


# ---------------------------------------------------------------------------
# Wrapper-side ProbSparse query selection (tiny, gather + top_k)
# ---------------------------------------------------------------------------
def _sampled_topk_mask(queries, keys, rng_key, factor):
    """Returns a {0,1} float mask [B, H, L_Q]: 1 for the top-u queries by the sparsity measure.
    Mirrors _prob_QK: sample indices torch.randint(L_K, (L_Q, sample_k)) shared over B, H."""
    b, l_q, h, d = queries.shape
    l_k = keys.shape[1]
    sample_k = min(factor * int(math.ceil(math.log(l_k))), l_k)
    n_top = min(factor * int(math.ceil(math.log(l_q))), l_q)

    idx = jax.random.randint(rng_key, (l_q, sample_k), 0, l_k)           # shared over B, H
    k_sample = keys[:, idx, :, :]                                        # [B, L_Q, S, H, D]
    qk_sample = jnp.einsum('blhd,blshd->bhls',
                           queries.astype(jnp.float32),
                           k_sample.astype(jnp.float32))                 # [B, H, L_Q, S]
    m_meas = jnp.max(qk_sample, axis=-1) - jnp.sum(qk_sample, axis=-1) / l_k
    top_idx = jax.lax.top_k(m_meas, n_top)[1]                            # [B, H, n_top]
    return jax.nn.one_hot(top_idx, l_q, dtype=jnp.float32).sum(axis=-2)  # [B, H, L_Q]


# ---------------------------------------------------------------------------
# Public wrapper
# ---------------------------------------------------------------------------
def prob_attention(queries, keys, values, rng_key, *,
                   factor=5, scale=None, mask_flag=True,
                   block_heads=8, block_q=256):
    """ProbAttention.forward. Inputs [B, L, H, D]; returns (context [B, H, L_Q, D], None)."""
    b, l_q, h, d = queries.shape
    l_k = keys.shape[1]
    if mask_flag:
        assert l_q == l_k, "mask_flag=True requires L_Q == L_V (as in the PyTorch module)"

    sc = float(scale) if scale is not None else 1.0 / math.sqrt(d)

    # ProbSparse top-u selection (cheap; done in the wrapper so the kernel has no serial argmax
    # chain and the query axis can be tiled).
    sel = _sampled_topk_mask(queries, keys, rng_key, factor)             # [B, H, L_Q]

    # [B, L, H, D] -> [B*H, L, D]  (mirrors .transpose(2, 1))
    # TODO(synk): accept [B, H, L, D] inputs directly to skip this HBM relayout.
    q = jnp.transpose(queries, (0, 2, 1, 3)).reshape(b * h, l_q, d)
    k = jnp.transpose(keys, (0, 2, 1, 3)).reshape(b * h, l_k, d)
    v = jnp.transpose(values, (0, 2, 1, 3)).reshape(b * h, l_k, d)
    sel = sel.reshape(b * h, l_q, 1)

    bh = b * h
    itemsize = jnp.dtype(queries.dtype).itemsize
    g_blk, tq = _choose_blocks(bh, l_q, l_k, d, itemsize, itemsize,
                               max_heads=block_heads, max_q=block_q)

    kernel = functools.partial(_prob_attention_kernel,
                               scale=sc, mask_flag=mask_flag, q_tile=tq)
    ctx = pl.pallas_call(
        kernel,
        out_shape=jax.ShapeDtypeStruct((bh, l_q, d), queries.dtype),
        grid_spec=pltpu.PrefetchScalarGridSpec(
            num_scalar_prefetch=0,
            grid=(bh // g_blk, l_q // tq),
            in_specs=[
                pl.BlockSpec((g_blk, tq, d), lambda i, qi: (i, qi, 0)),
                # K/V blocks ignore the query-tile axis -> no re-DMA while qi varies.
                pl.BlockSpec((g_blk, l_k, d), lambda i, qi: (i, 0, 0)),
                pl.BlockSpec((g_blk, l_k, d), lambda i, qi: (i, 0, 0)),
                pl.BlockSpec((g_blk, tq, 1), lambda i, qi: (i, qi, 0)),
            ],
            out_specs=pl.BlockSpec((g_blk, tq, d), lambda i, qi: (i, qi, 0)),
        ),
        compiler_params=pltpu.CompilerParams(
            dimension_semantics=("parallel", "parallel"),
            vmem_limit_bytes=48 * 1024 * 1024,
        ),
    )(q, k, v, sel)

    context = ctx.reshape(b, h, l_q, d)
    # TODO(synk): output_attention=True branch (dense attn map filled with 1/L_V) not implemented.
    return context, None


# ---------------------------------------------------------------------------
# Pure-JAX f32 reference (same sampled indices / selection) for correctness.
# ---------------------------------------------------------------------------
def prob_attention_ref(queries, keys, values, rng_key, *,
                       factor=5, scale=None, mask_flag=True):
    b, l_q, h, d = queries.shape
    l_k = keys.shape[1]
    sel = _sampled_topk_mask(queries, keys, rng_key, factor)             # [B, H, L_Q]

    q = jnp.transpose(queries, (0, 2, 1, 3)).astype(jnp.float32)
    k = jnp.transpose(keys, (0, 2, 1, 3)).astype(jnp.float32)
    v = jnp.transpose(values, (0, 2, 1, 3)).astype(jnp.float32)
    sc = float(scale) if scale is not None else 1.0 / math.sqrt(d)

    s = jnp.einsum('bhld,bhkd->bhlk', q, k) * sc
    if mask_flag:
        causal = jnp.arange(l_k)[None, :] <= jnp.arange(l_q)[:, None]
        s = jnp.where(causal, s, -jnp.inf)
        base = jnp.cumsum(v, axis=2)
    else:
        base = jnp.broadcast_to(jnp.mean(v, axis=2, keepdims=True), (b, h, l_q, d))
    attn = jax.nn.softmax(s, axis=-1)
    upd = jnp.einsum('bhlk,bhkd->bhld', attn, v)
    return jnp.where(sel[..., None] > 0.0, upd, base)


# ---------------------------------------------------------------------------
if __name__ == "__main__":
    batch, seq_len, n_heads, head_dim = 2, 32, 4, 32
    factor = 5

    root = jax.random.PRNGKey(0)
    kq, kk, kv, ks = jax.random.split(root, 4)
    queries = jax.random.normal(kq, (batch, seq_len, n_heads, head_dim), jnp.float32)
    keys_in = jax.random.normal(kk, (batch, seq_len, n_heads, head_dim), jnp.float32)
    values = jax.random.normal(kv, (batch, seq_len, n_heads, head_dim), jnp.float32)

    fwd = jax.jit(functools.partial(prob_attention, factor=factor, mask_flag=True))
    context, attn = fwd(queries, keys_in, values, ks)
    jax.block_until_ready(context)

    assert context.shape == (batch, n_heads, seq_len, head_dim)
    assert attn is None

    ref = prob_attention_ref(queries, keys_in, values, ks, factor=factor, mask_flag=True)
    max_err = float(jnp.max(jnp.abs(context - ref)))
    # bf16 MXU operands vs f32 reference -> bf16-appropriate tolerance.
    assert jnp.allclose(context, ref, atol=5e-2, rtol=5e-2), max_err

    print("KERNEL_OK")
</pallas_src>

<mosaic_0001>
module attributes {stable_mosaic.version = 11 : i64} {
  func.func @_prob_attention_kernel(%arg0: i32, %arg1: i32, %arg2: memref<4x32x32xf32, #tpu.memory_space<vmem>>, %arg3: memref<4x32x32xf32, #tpu.memory_space<vmem>>, %arg4: memref<4x32x32xf32, #tpu.memory_space<vmem>>, %arg5: memref<4x32x1xf32, #tpu.memory_space<vmem>>, %arg6: memref<4x32x32xf32, #tpu.memory_space<vmem>>) attributes {dimension_semantics = [#tpu.dimension_semantics<parallel>, #tpu.dimension_semantics<parallel>], iteration_bounds = array<i64: 2, 1>, scalar_prefetch = 0 : i64, scratch_operands = 0 : i64, tpu.core_type = #tpu.core_type<tc>, window_params = [{transform_indices = @transform_0, window_bounds = array<i64: 4, 32, 32>}, {transform_indices = @transform_1, window_bounds = array<i64: 4, 32, 32>}, {transform_indices = @transform_2, window_bounds = array<i64: 4, 32, 32>}, {transform_indices = @transform_3, window_bounds = array<i64: 4, 32, 1>}, {transform_indices = @transform_4, window_bounds = array<i64: 4, 32, 32>}]} {
    %c0 = arith.constant 0 : index
    %c0_0 = arith.constant 0 : index
    %c0_1 = arith.constant 0 : index
    %0 = vector.load %arg2[%c0, %c0_0, %c0_1] : memref<4x32x32xf32, #tpu.memory_space<vmem>>, vector<4x32x32xf32>
    %cst = arith.constant 0.176776692 : f32
    %1 = vector.broadcast %cst : f32 to vector<4x32x32xf32>
    %2 = arith.mulf %0, %1 : vector<4x32x32xf32>
    %3 = arith.truncf %2 : vector<4x32x32xf32> to vector<4x32x32xbf16>
    %c0_2 = arith.constant 0 : index
    %c0_3 = arith.constant 0 : index
    %c0_4 = arith.constant 0 : index
    %4 = vector.load %arg3[%c0_2, %c0_3, %c0_4] : memref<4x32x32xf32, #tpu.memory_space<vmem>>, vector<4x32x32xf32>
    %5 = arith.truncf %4 : vector<4x32x32xf32> to vector<4x32x32xbf16>
    %c0_5 = arith.constant 0 : index
    %c0_6 = arith.constant 0 : index
    %c0_7 = arith.constant 0 : index
    %6 = vector.load %arg5[%c0_5, %c0_6, %c0_7] : memref<4x32x1xf32, #tpu.memory_space<vmem>>, vector<4x32x1xf32>
    "tpu.trace_start"() <{level = 10 : i32, message = "gld,gkd->glk"}> : () -> ()
    %cst_8 = arith.constant dense<0.000000e+00> : vector<4x32x32xf32>
    %7 = tpu.matmul %3, %5, %cst_8 {dimension_numbers = #tpu.dot_dimension_numbers<[2], [2], [1], [1], [0, 0, 0, 1, 1, 1], [0], [0]>} : vector<4x32x32xbf16>, vector<4x32x32xbf16>, vector<4x32x32xf32> -> vector<4x32x32xf32>
    "tpu.trace_stop"() : () -> ()
    %8 = tpu.iota {dimensions = array<i32: 0>} : vector<32x32xi32>
    %c32_i32 = arith.constant 32 : i32
    %9 = arith.muli %arg1, %c32_i32 : i32
    %10 = vector.broadcast %9 : i32 to vector<32x32xi32>
    %11 = arith.addi %8, %10 : vector<32x32xi32>
    %12 = tpu.iota {dimensions = array<i32: 1>} : vector<32x32xi32>
    %13 = arith.cmpi sle, %12, %11 : vector<32x32xi32>
    %14 = vector.shape_cast %13 : vector<32x32xi1> to vector<1x32x32xi1>
    %cst_9 = arith.constant -1.000000e+30 : f32
    %15 = vector.shape_cast %14 : vector<1x32x32xi1> to vector<1x32x32xi1>
    %16 = vector.broadcast %15 : vector<1x32x32xi1> to vector<4x32x32xi1>
    %17 = vector.broadcast %cst_9 : f32 to vector<4x32x32xf32>
    %18 = arith.select %16, %7, %17 : vector<4x32x32xi1>, vector<4x32x32xf32>
    %cst_10 = arith.constant dense<0xFF800000> : vector<4x32xf32>
    %19 = vector.multi_reduction <maximumf>, %18, %cst_10 [2] : vector<4x32x32xf32> to vector<4x32xf32>
    %20 = vector.shape_cast %19 : vector<4x32xf32> to vector<4x32x1xf32>
    %21 = vector.broadcast %20 : vector<4x32x1xf32> to vector<4x32x32xf32>
    %22 = arith.subf %18, %21 : vector<4x32x32xf32>
    %23 = math.exp %22 : vector<4x32x32xf32>
    %cst_11 = arith.constant dense<0.000000e+00> : vector<4x32xf32>
    %24 = vector.multi_reduction <add>, %23, %cst_11 [2] : vector<4x32x32xf32> to vector<4x32xf32>
    %25 = vector.shape_cast %24 : vector<4x32xf32> to vector<4x32x1xf32>
    %26 = tpu.reciprocal %25 {approx = true} : vector<4x32x1xf32> -> vector<4x32x1xf32>
    %27 = vector.broadcast %26 : vector<4x32x1xf32> to vector<4x32x32xf32>
    %28 = arith.mulf %23, %27 : vector<4x32x32xf32>
    %29 = arith.extui %13 : vector<32x32xi1> to vector<32x32xi32>
    %30 = arith.sitofp %29 : vector<32x32xi32> to vector<32x32xf32>
    %31 = vector.shape_cast %30 : vector<32x32xf32> to vector<1x32x32xf32>
    %cst_12 = arith.constant 0.000000e+00 : f32
    %32 = vector.broadcast %cst_12 : f32 to vector<4x32x1xf32>
    %33 = arith.cmpf ogt, %6, %32 : vector<4x32x1xf32>
    %34 = vector.shape_cast %33 : vector<4x32x1xi1> to vector<4x32x1xi1>
    %35 = vector.broadcast %34 : vector<4x32x1xi1> to vector<4x32x32xi1>
    %36 = vector.shape_cast %31 : vector<1x32x32xf32> to vector<1x32x32xf32>
    %37 = vector.broadcast %36 : vector<1x32x32xf32> to vector<4x32x32xf32>
    %38 = arith.select %35, %28, %37 : vector<4x32x32xi1>, vector<4x32x32xf32>
    %39 = arith.truncf %38 : vector<4x32x32xf32> to vector<4x32x32xbf16>
    %c0_13 = arith.constant 0 : index
    %c0_14 = arith.constant 0 : index
    %c0_15 = arith.constant 0 : index
    %40 = vector.load %arg4[%c0_13, %c0_14, %c0_15] : memref<4x32x32xf32, #tpu.memory_space<vmem>>, vector<4x32x32xf32>
    %41 = arith.truncf %40 : vector<4x32x32xf32> to vector<4x32x32xbf16>
    "tpu.trace_start"() <{level = 10 : i32, message = "glk,gkd->gld"}> : () -> ()
    %cst_16 = arith.constant dense<0.000000e+00> : vector<4x32x32xf32>
    %42 = tpu.matmul %39, %41, %cst_16 {dimension_numbers = #tpu.dot_dimension_numbers<[2], [1], [1], [2], [0, 0, 0, 1, 1, 2], [0], [0]>} : vector<4x32x32xbf16>, vector<4x32x32xbf16>, vector<4x32x32xf32> -> vector<4x32x32xf32>
    "tpu.trace_stop"() : () -> ()
    %c0_17 = arith.constant 0 : index
    %c0_18 = arith.constant 0 : index
    %c0_19 = arith.constant 0 : index
    %43 = vector.load %arg6[%c0_17, %c0_18, %c0_19] : memref<4x32x32xf32, #tpu.memory_space<vmem>>, vector<4x32x32xf32>
    tpu.vector_store %arg6[%c0_17, %c0_18, %c0_19], %42 {strides = array<i32>} : memref<4x32x32xf32, #tpu.memory_space<vmem>>, vector<4x32x32xf32>,
    return
  }
  func.func @transform_0(%arg0: i32, %arg1: i32) -> (i32, i32, i32) {
    %c0_i32 = arith.constant 0 : i32
    %c0_i32_0 = arith.constant 0 : i32
    return %arg0, %arg1, %c0_i32 : i32, i32, i32
  }
  func.func @transform_1(%arg0: i32, %arg1: i32) -> (i32, i32, i32) {
    %c0_i32 = arith.constant 0 : i32
    %c0_i32_0 = arith.constant 0 : i32
    %c0_i32_1 = arith.constant 0 : i32
    return %arg0, %c0_i32, %c0_i32_0 : i32, i32, i32
  }
  func.func @transform_2(%arg0: i32, %arg1: i32) -> (i32, i32, i32) {
    %c0_i32 = arith.constant 0 : i32
    %c0_i32_0 = arith.constant 0 : i32
    %c0_i32_1 = arith.constant 0 : i32
    return %arg0, %c0_i32, %c0_i32_0 : i32, i32, i32
  }
  func.func @transform_3(%arg0: i32, %arg1: i32) -> (i32, i32, i32) {
    %c0_i32 = arith.constant 0 : i32
    %c0_i32_0 = arith.constant 0 : i32
    return %arg0, %arg1, %c0_i32 : i32, i32, i32
  }
  func.func @transform_4(%arg0: i32, %arg1: i32) -> (i32, i32, i32) {
    %c0_i32 = arith.constant 0 : i32
    %c0_i32_0 = arith.constant 0 : i32
    return %arg0, %arg1, %c0_i32 : i32, i32, i32
  }
}

</mosaic_0001>

<llo_original>
// kernel: prob_attention.1
$region0: #{prob_attention.1}
  #allocation0 [shape = 'u32[]', space=smem, size = 0x4, offset = 0x4, fixed_abs, tag = 'smem constant byte address 0x4 - core index']
  #allocation1 [shape = 'u32[144,128]{1,0:T(1,128)}', space=vmem, size = 0x12000, scoped, tag = 'internal scratch']
  %s0 = inlined_call_operand.vmem [shape: f32[8,32,32], index: 0, kind: input, shape index: {}]
  %s1 = inlined_call_operand.vmem [shape: f32[8,32,32], index: 1, kind: input, shape index: {}]
  %s2 = inlined_call_operand.vmem [shape: f32[8,32,32], index: 2, kind: input, shape index: {}]
  %s3 = inlined_call_operand.vmem [shape: f32[8,32,1], index: 3, kind: input, shape index: {}]
  %s4 = inlined_call_operand.hbm [shape: f32[8,32,32], index: 4, kind: output, shape index: {}]
  %s5 = sld [smem:[#allocation0]]
  $region49: #{prob_attention.1} parent=0
    _
  %s7 = ssub.s32 1, %s5
  %s8 = scalar_select 0, %s7, %s5
  $region1: #{prob_attention.1} parent=0
    #allocation2 [shape = 'u8[131072]{0}', space=vmem, size = 0x20000, scoped, tag = 'output window, operand 0']
    #allocation3 [shape = 's32[2]{0}', space=sflag, size = 0x8, scoped, tag = 'scoped memory for prob_attention.1']
    %9 = vsyncpa [#allocation3], 0
    %s10 = scalar_lea.sflag [#allocation3], 1
    %11 = vsyncpa %s10, 0
    loop: start=0, step=1, limit=4
    $region2: #{prob_attention.1} parent=1 // loop_pre_header
      _
    $region3: #{prob_attention.1} parent=1 // loop_header
      %s13 = sphi 0, %s17
      %p14 = scmp.ge.s32.totalorder %s13, 4
      %s20 = sphi 0, %s32
      %s21 = sphi 0, %s28
      %s22 = sphi 0, %s20
      %s23 = sphi 0, %s21
      %s24 = sphi 0, %s22
      %s25 = sphi 0, %s23
      %s37 = sphi 0, %s39
      %s40 = sphi 0, %s37
      %s41 = sphi 0, %s40
      %s57 = sphi 0, %s41
      %s63 = sphi 0, %s65
      %s66 = sphi 0, %s63
      %s67 = sphi 0, %s66
      %s83 = sphi 0, %s67
      %s89 = sphi 0, %s91
      %s92 = sphi 0, %s89
      %s93 = sphi 0, %s92
      %s109 = sphi 0, %s93
      %s117 = sphi 0, %s119
      %s120 = sphi 0, %s117
      %s121 = sphi 0, %s120
      %s137 = sphi 0, %s121
      %s145 = sphi 0, %s147
      %s148 = sphi 0, %s145
      %s149 = sphi 0, %s148
      %s165 = sphi 0, %s149
    $region4: #{prob_attention.1} parent=1 // loop_header_branch
      %16 = sbr.rel (%p14) target = $region8
    $region5: #{prob_attention.1} parent=1 // loop_body
      %s18 = ssub.s32 %s13, 1
      %s19 = ssub.s32 %s13, 2
      %s26 = sadd.s32 1, %s21
      %p27 = scmp.ge.s32.totalorder %s26, 1
      %s28 = scalar_select %p27, 0, %s26
      %s29 = sadd.s32 1, %s20
      %s30 = scalar_select %p27, %s29, %s20
      %p31 = scmp.ge.s32.totalorder %s30, 2
      %s32 = scalar_select %p31, 0, %s30
      %s33 = ssub.s32 %s20, %s32
      %s34 = ssub.s32 %s21, %s28
      %s35 = sor.u32 %s33, %s34
      %p36 = scmp.eq.s32.totalorder %s35, 0
      %s38 = sadd.s32 %s37, 1
      %s39 = scalar_select %p36, %s37, %s38
      %p42 = pneg %p36
      %p43 = scmp.eq.s32.totalorder %s13, 1
      %p44 = por %p42, %p43
      %p45 = scmp.ne.s32.totalorder %s37, %s40
      %p46 = scmp.eq.s32.totalorder %s13, 0
      %p47 = por %p45, %p46
      %p48 = scmp.ne.s32.totalorder %s37, %s40
      %p49 = scmp.eq.s32.totalorder %s18, 1
      %p50 = por %p48, %p49
      %p51 = scmp.ne.s32.totalorder %s40, %s41
      %p52 = scmp.eq.s32.totalorder %s18, 0
      %p53 = por %p51, %p52
      %p54 = scmp.ne.s32.totalorder %s40, %s41
      %p55 = scmp.eq.s32.totalorder %s19, 1
      %p56 = por %p54, %p55
      %p58 = scmp.ne.s32.totalorder %s41, %s57
      %p59 = scmp.eq.s32.totalorder %s19, 0
      %p60 = por %p58, %p59
      %s61 = ssub.s32 %s20, %s32
      %p62 = scmp.eq.s32.totalorder %s61, 0
      %s64 = sadd.s32 %s63, 1
      %s65 = scalar_select %p62, %s63, %s64
      %p68 = pneg %p62
      %p69 = scmp.eq.s32.totalorder %s13, 1
      %p70 = por %p68, %p69
      %p71 = scmp.ne.s32.totalorder %s63, %s66
      %p72 = scmp.eq.s32.totalorder %s13, 0
      %p73 = por %p71, %p72
      %p74 = scmp.ne.s32.totalorder %s63, %s66
      %p75 = scmp.eq.s32.totalorder %s18, 1
      %p76 = por %p74, %p75
      %p77 = scmp.ne.s32.totalorder %s66, %s67
      %p78 = scmp.eq.s32.totalorder %s18, 0
      %p79 = por %p77, %p78
      %p80 = scmp.ne.s32.totalorder %s66, %s67
      %p81 = scmp.eq.s32.totalorder %s19, 1
      %p82 = por %p80, %p81
      %p84 = scmp.ne.s32.totalorder %s67, %s83
      %p85 = scmp.eq.s32.totalorder %s19, 0
      %p86 = por %p84, %p85
      %s87 = ssub.s32 %s20, %s32
      %p88 = scmp.eq.s32.totalorder %s87, 0
      %s90 = sadd.s32 %s89, 1
      %s91 = scalar_select %p88, %s89, %s90
      %p94 = pneg %p88
      %p95 = scmp.eq.s32.totalorder %s13, 1
      %p96 = por %p94, %p95
      %p97 = scmp.ne.s32.totalorder %s89, %s92
      %p98 = scmp.eq.s32.totalorder %s13, 0
      %p99 = por %p97, %p98
      %p100 = scmp.ne.s32.totalorder %s89, %s92
      %p101 = scmp.eq.s32.totalorder %s18, 1
      %p102 = por %p100, %p101
      %p103 = scmp.ne.s32.totalorder %s92, %s93
      %p104 = scmp.eq.s32.totalorder %s18, 0
      %p105 = por %p103, %p104
      %p106 = scmp.ne.s32.totalorder %s92, %s93
      %p107 = scmp.eq.s32.totalorder %s19, 1
      %p108 = por %p106, %p107
      %p110 = scmp.ne.s32.totalorder %s93, %s109
      %p111 = scmp.eq.s32.totalorder %s19, 0
      %p112 = por %p110, %p111
      %s113 = ssub.s32 %s20, %s32
      %s114 = ssub.s32 %s21, %s28
      %s115 = sor.u32 %s113, %s114
      %p116 = scmp.eq.s32.totalorder %s115, 0
      %s118 = sadd.s32 %s117, 1
      %s119 = scalar_select %p116, %s117, %s118
      %p122 = pneg %p116
      %p123 = scmp.eq.s32.totalorder %s13, 1
      %p124 = por %p122, %p123
      %p125 = scmp.ne.s32.totalorder %s117, %s120
      %p126 = scmp.eq.s32.totalorder %s13, 0
      %p127 = por %p125, %p126
      %p128 = scmp.ne.s32.totalorder %s117, %s120
      %p129 = scmp.eq.s32.totalorder %s18, 1
      %p130 = por %p128, %p129
      %p131 = scmp.ne.s32.totalorder %s120, %s121
      %p132 = scmp.eq.s32.totalorder %s18, 0
      %p133 = por %p131, %p132
      %p134 = scmp.ne.s32.totalorder %s120, %s121
      %p135 = scmp.eq.s32.totalorder %s19, 1
      %p136 = por %p134, %p135
      %p138 = scmp.ne.s32.totalorder %s121, %s137
      %p139 = scmp.eq.s32.totalorder %s19, 0
      %p140 = por %p138, %p139
      %s141 = ssub.s32 %s20, %s32
      %s142 = ssub.s32 %s21, %s28
      %s143 = sor.u32 %s141, %s142
      %p144 = scmp.eq.s32.totalorder %s143, 0
      %s146 = sadd.s32 %s145, 1
      %s147 = scalar_select %p144, %s145, %s146
      %p150 = pneg %p144
      %p151 = scmp.eq.s32.totalorder %s13, 1
      %p152 = por %p150, %p151
      %p153 = scmp.ne.s32.totalorder %s145, %s148
      %p154 = scmp.eq.s32.totalorder %s13, 0
      %p155 = por %p153, %p154
      %p156 = scmp.ne.s32.totalorder %s145, %s148
      %p157 = scmp.eq.s32.totalorder %s18, 1
      %p158 = por %p156, %p157
      %p159 = scmp.ne.s32.totalorder %s148, %s149
      %p160 = scmp.eq.s32.totalorder %s18, 0
      %p161 = por %p159, %p160
      %p162 = scmp.ne.s32.totalorder %s148, %s149
      %p163 = scmp.eq.s32.totalorder %s19, 1
      %p164 = por %p162, %p163
      %p166 = scmp.ne.s32.totalorder %s149, %s165
      %p167 = scmp.eq.s32.totalorder %s19, 0
      %p168 = por %p166, %p167
      %p169 = scmp.le.s32.totalorder 1, %s13
      %p170 = scmp.lt.s32.totalorder %s13, 3
      %p171 = pnand %p169, %p170
      %p172 = pneg %p171
      // Predicated region
      $region9: #{prob_attention.1} parent=5 // pred_check
        _
      $region10: #{prob_attention.1} parent=5 // pred_check_branch
        %174 = sbr.rel (%p171) target = $region12
      $region11: #{prob_attention.1} parent=5 // pred_region
        %s175 = ssub.s32 %s13, 1
      $region12: #{prob_attention.1} parent=5 // pred_fallthru
        _
      %p176 = scmp.lt.s32.totalorder %s13, 2
      // Predicated region
      $region13: #{prob_attention.1} parent=5 // pred_check
        %p177 = pneg %p176
      $region14: #{prob_attention.1} parent=5 // pred_check_branch
        %179 = sbr.rel (%p177) target = $region16
      $region15: #{prob_attention.1} parent=5 // pred_region
        // Predicated region
        $region17: #{prob_attention.1} parent=15 // pred_check
          %p180 = pneg %p47
        $region18: #{prob_attention.1} parent=15 // pred_check_branch
          %182 = sbr.rel (%p180) target = $region20
        $region19: #{prob_attention.1} parent=15 // pred_region
          %s183 = smul.u32 4, %s20
          %s184 = smul.u32 4, %s21
          %p185 = scmp.lt.s32.totalorder %s183, 7
          %s186 = scalar_select %p185, %s183, 7
          %p187 = scmp.lt.s32.totalorder %s184, 3
          %s188 = scalar_select %p187, %s184, 3
          %s189 = smul.addr %s186, 4
          %s190 = sadd.s32 %s188, %s189
          %s191 = smul.addr %s190, 8
          %s192 = scalar_lea.vmem %s0, %s191
          %s193 = smul.u32 4, %s20
          %s194 = smul.u32 4, %s21
        $region20: #{prob_attention.1} parent=15 // pred_fallthru
          _
        // Predicated region
        $region21: #{prob_attention.1} parent=15 // pred_check
          %p195 = pneg %p73
        $region22: #{prob_attention.1} parent=15 // pred_check_branch
          %197 = sbr.rel (%p195) target = $region24
        $region23: #{prob_attention.1} parent=15 // pred_region
          %s198 = smul.u32 4, %s20
          %p199 = scmp.lt.s32.totalorder %s198, 7
          %s200 = scalar_select %p199, %s198, 7
          %s201 = smul.addr %s200, 4
          %s202 = smul.addr %s201, 8
          %s203 = scalar_lea.vmem %s1, %s202
          %s204 = smul.u32 4, %s20
        $region24: #{prob_attention.1} parent=15 // pred_fallthru
          _
        // Predicated region
        $region25: #{prob_attention.1} parent=15 // pred_check
          %p205 = pneg %p99
        $region26: #{prob_attention.1} parent=15 // pred_check_branch
          %207 = sbr.rel (%p205) target = $region28
        $region27: #{prob_attention.1} parent=15 // pred_region
          %s208 = smul.u32 4, %s20
          %p209 = scmp.lt.s32.totalorder %s208, 7
          %s210 = scalar_select %p209, %s208, 7
          %s211 = smul.addr %s210, 4
          %s212 = smul.addr %s211, 8
          %s213 = scalar_lea.vmem %s2, %s212
          %s214 = smul.u32 4, %s20
        $region28: #{prob_attention.1} parent=15 // pred_fallthru
          _
        // Predicated region
        $region29: #{prob_attention.1} parent=15 // pred_check
          %p215 = pneg %p127
        $region30: #{prob_attention.1} parent=15 // pred_check_branch
          %217 = sbr.rel (%p215) target = $region32
        $region31: #{prob_attention.1} parent=15 // pred_region
          %s218 = smul.u32 4, %s20
          %s219 = smul.u32 4, %s21
          %p220 = scmp.lt.s32.totalorder %s218, 7
          %s221 = scalar_select %p220, %s218, 7
          %p222 = scmp.lt.s32.totalorder %s219, 3
          %s223 = scalar_select %p222, %s219, 3
          %s224 = smul.addr %s221, 4
          %s225 = sadd.s32 %s223, %s224
          %s226 = smul.addr %s225, 8
          %s227 = scalar_lea.vmem %s3, %s226
          %s228 = smul.u32 4, %s20
          %s229 = smul.u32 4, %s21
        $region32: #{prob_attention.1} parent=15 // pred_fallthru
          _
      $region16: #{prob_attention.1} parent=5 // pred_fallthru
        _
      %p230 = scmp.le.s32.totalorder 1, %s13
      %p231 = scmp.lt.s32.totalorder %s13, 3
      %p232 = pnand %p230, %p231
      %p233 = pneg %p232
      // Predicated region
      $region33: #{prob_attention.1} parent=5 // pred_check
        _
      $region34: #{prob_attention.1} parent=5 // pred_check_branch
        %235 = sbr.rel (%p232) target = $region36
      $region35: #{prob_attention.1} parent=5 // pred_region
        %s236 = ssub.s32 %s13, 1
        %s237 = smul.u32 4, %s22
        %s238 = smul.u32 4, %s23
        %p239 = scmp.lt.s32.totalorder %s237, 7
        %s240 = scalar_select %p239, %s237, 7
        %p241 = scmp.lt.s32.totalorder %s238, 3
        %s242 = scalar_select %p241, %s238, 3
        %s243 = smul.addr %s240, 4
        %s244 = sadd.s32 %s242, %s243
        %s245 = smul.addr %s244, 8
        %s246 = scalar_lea.vmem %s0, %s245
        %p247 = pneg %p53
        %p248 = pneg %p50
        %s249 = smul.u32 4, %s22
        %p250 = scmp.lt.s32.totalorder %s249, 7
        %s251 = scalar_select %p250, %s249, 7
        %s252 = smul.addr %s251, 4
        %s253 = smul.addr %s252, 8
        %s254 = scalar_lea.vmem %s1, %s253
        %p255 = pneg %p79
        %p256 = pneg %p76
        %s257 = smul.u32 4, %s22
        %p258 = scmp.lt.s32.totalorder %s257, 7
        %s259 = scalar_select %p258, %s257, 7
        %s260 = smul.addr %s259, 4
        %s261 = smul.addr %s260, 8
        %s262 = scalar_lea.vmem %s2, %s261
        %p263 = pneg %p105
        %p264 = pneg %p102
        %s265 = smul.u32 4, %s22
        %s266 = smul.u32 4, %s23
        %p267 = scmp.lt.s32.totalorder %s265, 7
        %s268 = scalar_select %p267, %s265, 7
        %p269 = scmp.lt.s32.totalorder %s266, 3
        %s270 = scalar_select %p269, %s266, 3
        %s271 = smul.addr %s268, 4
        %s272 = sadd.s32 %s270, %s271
        %s273 = smul.addr %s272, 8
        %s274 = scalar_lea.vmem %s3, %s273
        %p275 = pneg %p133
        %p276 = pneg %p130
        %p277 = pneg %p161
        %p278 = pneg %p158
        %s279 = sand.u32 %s148, 1
        %s280 = scalar_lea.sflag [#allocation3], %s279
        %s281 = sand.u32 %s148, 1
        %s282 = smul.addr %s281, 128
        %s283 = scalar_lea.vmem [#allocation2], %s282
        %s284 = smul.u32 4, %s22
        %s285 = smul.u32 4, %s23
        %p286 = scmp.lt.s32.totalorder %s284, 7
        %s287 = scalar_select %p286, %s284, 7
        %p288 = scmp.lt.s32.totalorder %s285, 3
        %s289 = scalar_select %p288, %s285, 3
        %s290 = smul.addr %s287, 4
        %s291 = sadd.s32 %s289, %s290
        %s292 = smul.addr %s291, 8
        %s293 = scalar_lea.vmem %s0, %s292
        %s294 = smul.u32 4, %s22
        %s295 = smul.u32 4, %s23
        %s296 = smul.u32 4, %s22
        %p297 = scmp.lt.s32.totalorder %s296, 7
        %s298 = scalar_select %p297, %s296, 7
        %s299 = smul.addr %s298, 4
        %s300 = smul.addr %s299, 8
        %s301 = scalar_lea.vmem %s1, %s300
        %s302 = smul.u32 4, %s22
        %s303 = smul.u32 4, %s22
        %p304 = scmp.lt.s32.totalorder %s303, 7
        %s305 = scalar_select %p304, %s303, 7
        %s306 = smul.addr %s305, 4
        %s307 = smul.addr %s306, 8
        %s308 = scalar_lea.vmem %s2, %s307
        %s309 = smul.u32 4, %s22
        %s310 = smul.u32 4, %s22
        %s311 = smul.u32 4, %s23
        %p312 = scmp.lt.s32.totalorder %s310, 7
        %s313 = scalar_select %p312, %s310, 7
        %p314 = scmp.lt.s32.totalorder %s311, 3
        %s315 = scalar_select %p314, %s311, 3
        %s316 = smul.addr %s313, 4
        %s317 = sadd.s32 %s315, %s316
        %s318 = smul.addr %s317, 8
        %s319 = scalar_lea.vmem %s3, %s318
        %s320 = smul.u32 4, %s22
        %s321 = smul.u32 4, %s23
        %s322 = smul.u32 4, %s22
        %s323 = smul.u32 4, %s23
        %v325 = vld [vmem:[%s293] sm:$0xff]
        %v326 = vld [vmem:[%s293 + $0x8] sm:$0xff]
        %v327 = vld [vmem:[%s293 + $0x10] sm:$0xff]
        %v328 = vld [vmem:[%s293 + $0x18] sm:$0xff]
        %v329 = vld [vmem:[%s293 + $0x20] sm:$0xff]
        %v330 = vld [vmem:[%s293 + $0x28] sm:$0xff]
        %v331 = vld [vmem:[%s293 + $0x30] sm:$0xff]
        %v332 = vld [vmem:[%s293 + $0x38] sm:$0xff]
        %v333 = vld [vmem:[%s293 + $0x40] sm:$0xff]
        %v334 = vld [vmem:[%s293 + $0x48] sm:$0xff]
        %v335 = vld [vmem:[%s293 + $0x50] sm:$0xff]
        %v336 = vld [vmem:[%s293 + $0x58] sm:$0xff]
        %v337 = vld [vmem:[%s293 + $0x60] sm:$0xff]
        %v338 = vld [vmem:[%s293 + $0x68] sm:$0xff]
        %v339 = vld [vmem:[%s293 + $0x70] sm:$0xff]
        %v340 = vld [vmem:[%s293 + $0x78] sm:$0xff]
        %v341 = vmul.f32 %v325, 0.17677669
        %v342 = vmul.f32 %v326, 0.17677669
        %v343 = vmul.f32 %v327, 0.17677669
        %v344 = vmul.f32 %v328, 0.17677669
        %v345 = vmul.f32 %v329, 0.17677669
        %v346 = vmul.f32 %v330, 0.17677669
        %v347 = vmul.f32 %v331, 0.17677669
        %v348 = vmul.f32 %v332, 0.17677669
        %v349 = vmul.f32 %v333, 0.17677669
        %v350 = vmul.f32 %v334, 0.17677669
        %v351 = vmul.f32 %v335, 0.17677669
        %v352 = vmul.f32 %v336, 0.17677669
        %v353 = vmul.f32 %v337, 0.17677669
        %v354 = vmul.f32 %v338, 0.17677669
        %v355 = vmul.f32 %v339, 0.17677669
        %v356 = vmul.f32 %v340, 0.17677669
        %v357 = vpack.c.bf16 %v342, %v341
        %v358 = vpack.c.bf16 %v344, %v343
        %v359 = vpack.c.bf16 %v346, %v345
        %v360 = vpack.c.bf16 %v348, %v347
        %v361 = vpack.c.bf16 %v350, %v349
        %v362 = vpack.c.bf16 %v352, %v351
        %v363 = vpack.c.bf16 %v354, %v353
        %v364 = vpack.c.bf16 %v356, %v355
        %v365 = vld [vmem:[%s301] sm:$0xff]
        %v366 = vld [vmem:[%s301 + $0x8] sm:$0xff]
        %v367 = vld [vmem:[%s301 + $0x10] sm:$0xff]
        %v368 = vld [vmem:[%s301 + $0x18] sm:$0xff]
        %v369 = vld [vmem:[%s301 + $0x20] sm:$0xff]
        %v370 = vld [vmem:[%s301 + $0x28] sm:$0xff]
        %v371 = vld [vmem:[%s301 + $0x30] sm:$0xff]
        %v372 = vld [vmem:[%s301 + $0x38] sm:$0xff]
        %v373 = vld [vmem:[%s301 + $0x40] sm:$0xff]
        %v374 = vld [vmem:[%s301 + $0x48] sm:$0xff]
        %v375 = vld [vmem:[%s301 + $0x50] sm:$0xff]
        %v376 = vld [vmem:[%s301 + $0x58] sm:$0xff]
        %v377 = vld [vmem:[%s301 + $0x60] sm:$0xff]
        %v378 = vld [vmem:[%s301 + $0x68] sm:$0xff]
        %v379 = vld [vmem:[%s301 + $0x70] sm:$0xff]
        %v380 = vld [vmem:[%s301 + $0x78] sm:$0xff]
        %v381 = vpack.c.bf16 %v366, %v365
        %v382 = vpack.c.bf16 %v368, %v367
        %v383 = vpack.c.bf16 %v370, %v369
        %v384 = vpack.c.bf16 %v372, %v371
        %v385 = vpack.c.bf16 %v374, %v373
        %v386 = vpack.c.bf16 %v376, %v375
        %v387 = vpack.c.bf16 %v378, %v377
        %v388 = vpack.c.bf16 %v380, %v379
        %v389 = vld [vmem:[%s319] sm:$0xff]
        %v390 = vld [vmem:[%s319 + $0x8] sm:$0xff]
        %v391 = vld [vmem:[%s319 + $0x10] sm:$0xff]
        %v392 = vld [vmem:[%s319 + $0x18] sm:$0xff]
        %v393 = vld [vmem:[%s319 + $0x20] sm:$0xff]
        %v394 = vld [vmem:[%s319 + $0x28] sm:$0xff]
        %v395 = vld [vmem:[%s319 + $0x30] sm:$0xff]
        %v396 = vld [vmem:[%s319 + $0x38] sm:$0xff]
        %v397 = vld [vmem:[%s319 + $0x40] sm:$0xff]
        %v398 = vld [vmem:[%s319 + $0x48] sm:$0xff]
        %v399 = vld [vmem:[%s319 + $0x50] sm:$0xff]
        %v400 = vld [vmem:[%s319 + $0x58] sm:$0xff]
        %v401 = vld [vmem:[%s319 + $0x60] sm:$0xff]
        %v402 = vld [vmem:[%s319 + $0x68] sm:$0xff]
        %v403 = vld [vmem:[%s319 + $0x70] sm:$0xff]
        %v404 = vld [vmem:[%s319 + $0x78] sm:$0xff]
        %vm405 = vcmask 261120
        %v407 = vsel %vm405, %v357, 0
        %v410 = vsel %vm405, %v358, 0
        %v413 = vsel %vm405, %v381, 0
        %v416 = vsel %vm405, %v382, 0
        %418 = vmatprep.subr.bf16.mxu0 0
        %419 = vmatpush1.bf16.xpose.msra.mxu0 0
        %420 = vmatprep.subr.bf16.mxu0 0
        %421 = vmatpush1.bf16.xpose.msra.mxu0 0
        %422 = vmatprep.subr.bf16.mxu0 0
        %423 = vmatpush1.bf16.xpose.msra.mxu0 0
        %424 = vmatprep.subr.bf16.mxu0 0
        %425 = vmatpush1.bf16.xpose.msra.mxu0 0
        %426 = vmatprep.subr.bf16.mxu0 0
        %427 = vmatpush1.bf16.xpose.msra.mxu0 0
        %428 = vmatprep.subr.bf16.mxu0 0
        %429 = vmatpush1.bf16.xpose.msra.mxu0 0
        %430 = vmatprep.subr.bf16.mxu0 0
        %431 = vmatpush1.bf16.xpose.msra.mxu0 %v416
        %432 = vmatprep.subr.bf16.mxu0 0
        %433 = vmatpush1.bf16.xpose.msra.mxu0 %v413
        %434 = vmatprep.subr.bf16.mxu0 0
        %435 = vmatpush2.bf16.xpose.msra.mxu0 0
        %436 = vmatprep.subr.bf16.mxu0 0
        %437 = vmatpush2.bf16.xpose.msra.mxu0 0
        %438 = vmatprep.subr.bf16.mxu0 0
        %439 = vmatpush2.bf16.xpose.msra.mxu0 0
        %440 = vmatprep.subr.bf16.mxu0 0
        %441 = vmatpush2.bf16.xpose.msra.mxu0 0
        %442 = vmatprep.subr.bf16.mxu0 0
        %443 = vmatpush2.bf16.xpose.msra.mxu0 0
        %444 = vmatprep.subr.bf16.mxu0 0
        %445 = vmatpush2.bf16.xpose.msra.mxu0 0
        %446 = vmatprep.subr.bf16.mxu0 0
        %447 = vmatpush2.bf16.xpose.msra.mxu0 0
        %448 = vmatprep.subr.bf16.mxu0 0
        %449 = vmatpush2.bf16.xpose.msra.mxu0 0
        %450 = vmatprep.mubr.bf16.mxu0 0
        %451 = vmatmul.mubr.bf16.gmra.mxu0 %v407
        %v452 = vpop.f32.mrf.mxu0
        %v453 = vadd.f32 0.0, %v452
        %v454 = vpop.f32.mrf.mxu0
        %v455 = vpop.f32.mrf.mxu0
        %v456 = vadd.f32 0.0, %v455
        %v457 = vpop.f32.mrf.mxu0
        %458 = vmatprep.mubr.bf16.mxu0 0
        %459 = vmatmul.mubr.bf16.gmra.mxu0 %v410
        %v460 = vpop.f32.mrf.mxu0
        %v461 = vadd.f32 0.0, %v460
        %v462 = vpop.f32.mrf.mxu0
        %v463 = vpop.f32.mrf.mxu0
        %v464 = vadd.f32 0.0, %v463
        %v465 = vpop.f32.mrf.mxu0
        %466 = vdwg.mxu0
        %v468 = vsel %vm405, %v359, 0
        %v471 = vsel %vm405, %v360, 0
        %v474 = vsel %vm405, %v383, 0
        %v477 = vsel %vm405, %v384, 0
        %479 = vmatprep.subr.bf16.mxu0 0
        %480 = vmatpush1.bf16.xpose.msra.mxu0 0
        %481 = vmatprep.subr.bf16.mxu0 0
        %482 = vmatpush1.bf16.xpose.msra.mxu0 0
        %483 = vmatprep.subr.bf16.mxu0 0
        %484 = vmatpush1.bf16.xpose.msra.mxu0 0
        %485 = vmatprep.subr.bf16.mxu0 0
        %486 = vmatpush1.bf16.xpose.msra.mxu0 0
        %487 = vmatprep.subr.bf16.mxu0 0
        %488 = vmatpush1.bf16.xpose.msra.mxu0 0
        %489 = vmatprep.subr.bf16.mxu0 0
        %490 = vmatpush1.bf16.xpose.msra.mxu0 0
        %491 = vmatprep.subr.bf16.mxu0 0
        %492 = vmatpush1.bf16.xpose.msra.mxu0 %v477
        %493 = vmatprep.subr.bf16.mxu0 0
        %494 = vmatpush1.bf16.xpose.msra.mxu0 %v474
        %495 = vmatprep.subr.bf16.mxu0 0
        %496 = vmatpush2.bf16.xpose.msra.mxu0 0
        %497 = vmatprep.subr.bf16.mxu0 0
        %498 = vmatpush2.bf16.xpose.msra.mxu0 0
        %499 = vmatprep.subr.bf16.mxu0 0
        %500 = vmatpush2.bf16.xpose.msra.mxu0 0
        %501 = vmatprep.subr.bf16.mxu0 0
        %502 = vmatpush2.bf16.xpose.msra.mxu0 0
        %503 = vmatprep.subr.bf16.mxu0 0
        %504 = vmatpush2.bf16.xpose.msra.mxu0 0
        %505 = vmatprep.subr.bf16.mxu0 0
        %506 = vmatpush2.bf16.xpose.msra.mxu0 0
        %507 = vmatprep.subr.bf16.mxu0 0
        %508 = vmatpush2.bf16.xpose.msra.mxu0 0
        %509 = vmatprep.subr.bf16.mxu0 0
        %510 = vmatpush2.bf16.xpose.msra.mxu0 0
        %511 = vmatprep.mubr.bf16.mxu0 0
        %512 = vmatmul.mubr.bf16.gmra.mxu0 %v468
        %v513 = vpop.f32.mrf.mxu0
        %v514 = vadd.f32 0.0, %v513
        %v515 = vpop.f32.mrf.mxu0
        %v516 = vpop.f32.mrf.mxu0
        %v517 = vadd.f32 0.0, %v516
        %v518 = vpop.f32.mrf.mxu0
        %519 = vmatprep.mubr.bf16.mxu0 0
        %520 = vmatmul.mubr.bf16.gmra.mxu0 %v471
        %v521 = vpop.f32.mrf.mxu0
        %v522 = vadd.f32 0.0, %v521
        %v523 = vpop.f32.mrf.mxu0
        %v524 = vpop.f32.mrf.mxu0
        %v525 = vadd.f32 0.0, %v524
        %v526 = vpop.f32.mrf.mxu0
        %527 = vdwg.mxu0
        %v529 = vsel %vm405, %v361, 0
        %v532 = vsel %vm405, %v362, 0
        %v535 = vsel %vm405, %v385, 0
        %v538 = vsel %vm405, %v386, 0
        %540 = vmatprep.subr.bf16.mxu0 0
        %541 = vmatpush1.bf16.xpose.msra.mxu0 0
        %542 = vmatprep.subr.bf16.mxu0 0
        %543 = vmatpush1.bf16.xpose.msra.mxu0 0
        %544 = vmatprep.subr.bf16.mxu0 0
        %545 = vmatpush1.bf16.xpose.msra.mxu0 0
        %546 = vmatprep.subr.bf16.mxu0 0
        %547 = vmatpush1.bf16.xpose.msra.mxu0 0
        %548 = vmatprep.subr.bf16.mxu0 0
        %549 = vmatpush1.bf16.xpose.msra.mxu0 0
        %550 = vmatprep.subr.bf16.mxu0 0
        %551 = vmatpush1.bf16.xpose.msra.mxu0 0
        %552 = vmatprep.subr.bf16.mxu0 0
        %553 = vmatpush1.bf16.xpose.msra.mxu0 %v538
        %554 = vmatprep.subr.bf16.mxu0 0
        %555 = vmatpush1.bf16.xpose.msra.mxu0 %v535
        %556 = vmatprep.subr.bf16.mxu0 0
        %557 = vmatpush2.bf16.xpose.msra.mxu0 0
        %558 = vmatprep.subr.bf16.mxu0 0
        %559 = vmatpush2.bf16.xpose.msra.mxu0 0
        %560 = vmatprep.subr.bf16.mxu0 0
        %561 = vmatpush2.bf16.xpose.msra.mxu0 0
        %562 = vmatprep.subr.bf16.mxu0 0
        %563 = vmatpush2.bf16.xpose.msra.mxu0 0
        %564 = vmatprep.subr.bf16.mxu0 0
        %565 = vmatpush2.bf16.xpose.msra.mxu0 0
        %566 = vmatprep.subr.bf16.mxu0 0
        %567 = vmatpush2.bf16.xpose.msra.mxu0 0
        %568 = vmatprep.subr.bf16.mxu0 0
        %569 = vmatpush2.bf16.xpose.msra.mxu0 0
        %570 = vmatprep.subr.bf16.mxu0 0
        %571 = vmatpush2.bf16.xpose.msra.mxu0 0
        %572 = vmatprep.mubr.bf16.mxu0 0
        %573 = vmatmul.mubr.bf16.gmra.mxu0 %v529
        %v574 = vpop.f32.mrf.mxu0
        %v575 = vadd.f32 0.0, %v574
        %v576 = vpop.f32.mrf.mxu0
        %v577 = vpop.f32.mrf.mxu0
        %v578 = vadd.f32 0.0, %v577
        %v579 = vpop.f32.mrf.mxu0
        %580 = vmatprep.mubr.bf16.mxu0 0
        %581 = vmatmul.mubr.bf16.gmra.mxu0 %v532
        %v582 = vpop.f32.mrf.mxu0
        %v583 = vadd.f32 0.0, %v582
        %v584 = vpop.f32.mrf.mxu0
        %v585 = vpop.f32.mrf.mxu0
        %v586 = vadd.f32 0.0, %v585
        %v587 = vpop.f32.mrf.mxu0
        %588 = vdwg.mxu0
        %v590 = vsel %vm405, %v363, 0
        %v593 = vsel %vm405, %v364, 0
        %v596 = vsel %vm405, %v387, 0
        %v599 = vsel %vm405, %v388, 0
        %601 = vmatprep.subr.bf16.mxu0 0
        %602 = vmatpush1.bf16.xpose.msra.mxu0 0
        %603 = vmatprep.subr.bf16.mxu0 0
        %604 = vmatpush1.bf16.xpose.msra.mxu0 0
        %605 = vmatprep.subr.bf16.mxu0 0
        %606 = vmatpush1.bf16.xpose.msra.mxu0 0
        %607 = vmatprep.subr.bf16.mxu0 0
        %608 = vmatpush1.bf16.xpose.msra.mxu0 0
        %609 = vmatprep.subr.bf16.mxu0 0
        %610 = vmatpush1.bf16.xpose.msra.mxu0 0
        %611 = vmatprep.subr.bf16.mxu0 0
        %612 = vmatpush1.bf16.xpose.msra.mxu0 0
        %613 = vmatprep.subr.bf16.mxu0 0
        %614 = vmatpush1.bf16.xpose.msra.mxu0 %v599
        %615 = vmatprep.subr.bf16.mxu0 0
        %616 = vmatpush1.bf16.xpose.msra.mxu0 %v596
        %617 = vmatprep.subr.bf16.mxu0 0
        %618 = vmatpush2.bf16.xpose.msra.mxu0 0
        %619 = vmatprep.subr.bf16.mxu0 0
        %620 = vmatpush2.bf16.xpose.msra.mxu0 0
        %621 = vmatprep.subr.bf16.mxu0 0
        %622 = vmatpush2.bf16.xpose.msra.mxu0 0
        %623 = vmatprep.subr.bf16.mxu0 0
        %624 = vmatpush2.bf16.xpose.msra.mxu0 0
        %625 = vmatprep.subr.bf16.mxu0 0
        %626 = vmatpush2.bf16.xpose.msra.mxu0 0
        %627 = vmatprep.subr.bf16.mxu0 0
        %628 = vmatpush2.bf16.xpose.msra.mxu0 0
        %629 = vmatprep.subr.bf16.mxu0 0
        %630 = vmatpush2.bf16.xpose.msra.mxu0 0
        %631 = vmatprep.subr.bf16.mxu0 0
        %632 = vmatpush2.bf16.xpose.msra.mxu0 0
        %633 = vmatprep.mubr.bf16.mxu0 0
        %634 = vmatmul.mubr.bf16.gmra.mxu0 %v590
        %v635 = vpop.f32.mrf.mxu0
        %v636 = vadd.f32 0.0, %v635
        %v637 = vpop.f32.mrf.mxu0
        %v638 = vpop.f32.mrf.mxu0
        %v639 = vadd.f32 0.0, %v638
        %v640 = vpop.f32.mrf.mxu0
        %641 = vmatprep.mubr.bf16.mxu0 0
        %642 = vmatmul.mubr.bf16.gmra.mxu0 %v593
        %v643 = vpop.f32.mrf.mxu0
        %v644 = vadd.f32 0.0, %v643
        %v645 = vpop.f32.mrf.mxu0
        %v646 = vpop.f32.mrf.mxu0
        %v647 = vadd.f32 0.0, %v646
        %v648 = vpop.f32.mrf.mxu0
        %649 = vdwg.mxu0
        %v650 = vlaneseq
        %v651 = vshrl.u32 %v650, 7
        %v652 = vadd.s32 %v651, 8
        %v653 = vadd.s32 %v651, 16
        %v654 = vadd.s32 %v651, 24
        %s655 = smul.u32 %s23, 32
        %v656 = vstv %s655
        %v657 = vadd.s32 %v651, %v656
        %v658 = vadd.s32 %v652, %v656
        %v659 = vadd.s32 %v653, %v656
        %v660 = vadd.s32 %v654, %v656
        %v661 = vlaneseq
        %v662 = vand.u32 %v661, 127
        %vm663 = vcmp.le.s32.totalorder %v662, %v657
        %vm664 = vcmp.le.s32.totalorder %v662, %v658
        %vm665 = vcmp.le.s32.totalorder %v662, %v659
        %vm666 = vcmp.le.s32.totalorder %v662, %v660
        %v667 = vsel %vm663, 1, 0
        %v668 = vsel %vm664, 1, 0
        %v669 = vsel %vm665, 1, 0
        %v670 = vsel %vm666, 1, 0
        %vm671 = vcmp.eq.s32.totalorder %v667, 1
        %vm672 = vcmp.eq.s32.totalorder %v668, 1
        %vm673 = vcmp.eq.s32.totalorder %v669, 1
        %vm674 = vcmp.eq.s32.totalorder %v670, 1
        %v675 = vsel %vm671, %v453, -1e+30
        %v676 = vsel %vm672, %v456, -1e+30
        %v677 = vsel %vm673, %v461, -1e+30
        %v678 = vsel %vm674, %v464, -1e+30
        %v679 = vsel %vm671, %v514, -1e+30
        %v680 = vsel %vm672, %v517, -1e+30
        %v681 = vsel %vm673, %v522, -1e+30
        %v682 = vsel %vm674, %v525, -1e+30
        %v683 = vsel %vm671, %v575, -1e+30
        %v684 = vsel %vm672, %v578, -1e+30
        %v685 = vsel %vm673, %v583, -1e+30
        %v686 = vsel %vm674, %v586, -1e+30
        %v687 = vsel %vm671, %v636, -1e+30
        %v688 = vsel %vm672, %v639, -1e+30
        %v689 = vsel %vm673, %v644, -1e+30
        %v690 = vsel %vm674, %v647, -1e+30
        %v691 = vsel %vm405, %v675, -inf
        %692 = vmax.xlane.f32.xlu0 %v691
        %v693 = vpop.xlane.xlu0 %692
        %v694 = vsel %vm405, %v676, -inf
        %695 = vmax.xlane.f32.xlu0 %v694
        %v696 = vpop.xlane.xlu0 %695
        %v697 = vsel %vm405, %v677, -inf
        %698 = vmax.xlane.f32.xlu0 %v697
        %v699 = vpop.xlane.xlu0 %698
        %v700 = vsel %vm405, %v678, -inf
        %701 = vmax.xlane.f32.xlu0 %v700
        %v702 = vpop.xlane.xlu0 %701
        %v703 = vsel %vm405, %v679, -inf
        %704 = vmax.xlane.f32.xlu0 %v703
        %v705 = vpop.xlane.xlu0 %704
        %v706 = vsel %vm405, %v680, -inf
        %707 = vmax.xlane.f32.xlu0 %v706
        %v708 = vpop.xlane.xlu0 %707
        %v709 = vsel %vm405, %v681, -inf
        %710 = vmax.xlane.f32.xlu0 %v709
        %v711 = vpop.xlane.xlu0 %710
        %v712 = vsel %vm405, %v682, -inf
        %713 = vmax.xlane.f32.xlu0 %v712
        %v714 = vpop.xlane.xlu0 %713
        %v715 = vsel %vm405, %v683, -inf
        %716 = vmax.xlane.f32.xlu0 %v715
        %v717 = vpop.xlane.xlu0 %716
        %v718 = vsel %vm405, %v684, -inf
        %719 = vmax.xlane.f32.xlu0 %v718
        %v720 = vpop.xlane.xlu0 %719
        %v721 = vsel %vm405, %v685, -inf
        %722 = vmax.xlane.f32.xlu0 %v721
        %v723 = vpop.xlane.xlu0 %722
        %v724 = vsel %vm405, %v686, -inf
        %725 = vmax.xlane.f32.xlu0 %v724
        %v726 = vpop.xlane.xlu0 %725
        %v727 = vsel %vm405, %v687, -inf
        %728 = vmax.xlane.f32.xlu0 %v727
        %v729 = vpop.xlane.xlu0 %728
        %v730 = vsel %vm405, %v688, -inf
        %731 = vmax.xlane.f32.xlu0 %v730
        %v732 = vpop.xlane.xlu0 %731
        %v733 = vsel %vm405, %v689, -inf
        %734 = vmax.xlane.f32.xlu0 %v733
        %v735 = vpop.xlane.xlu0 %734
        %v736 = vsel %vm405, %v690, -inf
        %737 = vmax.xlane.f32.xlu0 %v736
        %v738 = vpop.xlane.xlu0 %737
        %v739 = vsub.f32 %v675, %v693
        %v740 = vsub.f32 %v676, %v696
        %v741 = vsub.f32 %v677, %v699
        %v742 = vsub.f32 %v678, %v702
        %v743 = vsub.f32 %v679, %v705
        %v744 = vsub.f32 %v680, %v708
        %v745 = vsub.f32 %v681, %v711
        %v746 = vsub.f32 %v682, %v714
        %v747 = vsub.f32 %v683, %v717
        %v748 = vsub.f32 %v684, %v720
        %v749 = vsub.f32 %v685, %v723
        %v750 = vsub.f32 %v686, %v726
        %v751 = vsub.f32 %v687, %v729
        %v752 = vsub.f32 %v688, %v732
        %v753 = vsub.f32 %v689, %v735
        %v754 = vsub.f32 %v690, %v738
        %v755 = vmul.f32 %v739, 1.442695
        %v756 = vpow.pop %v755
        %v757 = vmul.f32 %v740, 1.442695
        %v758 = vpow.pop %v757
        %v759 = vmul.f32 %v741, 1.442695
        %v760 = vpow.pop %v759
        %v761 = vmul.f32 %v742, 1.442695
        %v762 = vpow.pop %v761
        %v763 = vmul.f32 %v743, 1.442695
        %v764 = vpow.pop %v763
        %v765 = vmul.f32 %v744, 1.442695
        %v766 = vpow.pop %v765
        %v767 = vmul.f32 %v745, 1.442695
        %v768 = vpow.pop %v767
        %v769 = vmul.f32 %v746, 1.442695
        %v770 = vpow.pop %v769
        %v771 = vmul.f32 %v747, 1.442695
        %v772 = vpow.pop %v771
        %v773 = vmul.f32 %v748, 1.442695
        %v774 = vpow.pop %v773
        %v775 = vmul.f32 %v749, 1.442695
        %v776 = vpow.pop %v775
        %v777 = vmul.f32 %v750, 1.442695
        %v778 = vpow.pop %v777
        %v779 = vmul.f32 %v751, 1.442695
        %v780 = vpow.pop %v779
        %v781 = vmul.f32 %v752, 1.442695
        %v782 = vpow.pop %v781
        %v783 = vmul.f32 %v753, 1.442695
        %v784 = vpow.pop %v783
        %v785 = vmul.f32 %v754, 1.442695
        %v786 = vpow.pop %v785
        %v787 = vsel %vm405, %v756, 0.0
        %788 = vadd.xlane.f32.xlu0 %v787
        %v789 = vpop.xlane.xlu0 %788
        %v790 = vsel %vm405, %v758, 0.0
        %791 = vadd.xlane.f32.xlu0 %v790
        %v792 = vpop.xlane.xlu0 %791
        %v793 = vsel %vm405, %v760, 0.0
        %794 = vadd.xlane.f32.xlu0 %v793
        %v795 = vpop.xlane.xlu0 %794
        %v796 = vsel %vm405, %v762, 0.0
        %797 = vadd.xlane.f32.xlu0 %v796
        %v798 = vpop.xlane.xlu0 %797
        %v799 = vsel %vm405, %v764, 0.0
        %800 = vadd.xlane.f32.xlu0 %v799
        %v801 = vpop.xlane.xlu0 %800
        %v802 = vsel %vm405, %v766, 0.0
        %803 = vadd.xlane.f32.xlu0 %v802
        %v804 = vpop.xlane.xlu0 %803
        %v805 = vsel %vm405, %v768, 0.0
        %806 = vadd.xlane.f32.xlu0 %v805
        %v807 = vpop.xlane.xlu0 %806
        %v808 = vsel %vm405, %v770, 0.0
        %809 = vadd.xlane.f32.xlu0 %v808
        %v810 = vpop.xlane.xlu0 %809
        %v811 = vsel %vm405, %v772, 0.0
        %812 = vadd.xlane.f32.xlu0 %v811
        %v813 = vpop.xlane.xlu0 %812
        %v814 = vsel %vm405, %v774, 0.0
        %815 = vadd.xlane.f32.xlu0 %v814
        %v816 = vpop.xlane.xlu0 %815
        %v817 = vsel %vm405, %v776, 0.0
        %818 = vadd.xlane.f32.xlu0 %v817
        %v819 = vpop.xlane.xlu0 %818
        %v820 = vsel %vm405, %v778, 0.0
        %821 = vadd.xlane.f32.xlu0 %v820
        %v822 = vpop.xlane.xlu0 %821
        %v823 = vsel %vm405, %v780, 0.0
        %824 = vadd.xlane.f32.xlu0 %v823
        %v825 = vpop.xlane.xlu0 %824
        %v826 = vsel %vm405, %v782, 0.0
        %827 = vadd.xlane.f32.xlu0 %v826
        %v828 = vpop.xlane.xlu0 %827
        %v829 = vsel %vm405, %v784, 0.0
        %830 = vadd.xlane.f32.xlu0 %v829
        %v831 = vpop.xlane.xlu0 %830
        %v832 = vsel %vm405, %v786, 0.0
        %833 = vadd.xlane.f32.xlu0 %v832
        %v834 = vpop.xlane.xlu0 %833
        %v835 = vrcp.pop %v789
        %v836 = vrcp.pop %v792
        %v837 = vrcp.pop %v795
        %v838 = vrcp.pop %v798
        %v839 = vrcp.pop %v801
        %v840 = vrcp.pop %v804
        %v841 = vrcp.pop %v807
        %v842 = vrcp.pop %v810
        %v843 = vrcp.pop %v813
        %v844 = vrcp.pop %v816
        %v845 = vrcp.pop %v819
        %v846 = vrcp.pop %v822
        %v847 = vrcp.pop %v825
        %v848 = vrcp.pop %v828
        %v849 = vrcp.pop %v831
        %v850 = vrcp.pop %v834
        %v851 = vmul.f32 %v756, %v835
        %v852 = vmul.f32 %v758, %v836
        %v853 = vmul.f32 %v760, %v837
        %v854 = vmul.f32 %v762, %v838
        %v855 = vmul.f32 %v764, %v839
        %v856 = vmul.f32 %v766, %v840
        %v857 = vmul.f32 %v768, %v841
        %v858 = vmul.f32 %v770, %v842
        %v859 = vmul.f32 %v772, %v843
        %v860 = vmul.f32 %v774, %v844
        %v861 = vmul.f32 %v776, %v845
        %v862 = vmul.f32 %v778, %v846
        %v863 = vmul.f32 %v780, %v847
        %v864 = vmul.f32 %v782, %v848
        %v865 = vmul.f32 %v784, %v849
        %v866 = vmul.f32 %v786, %v850
        %v867 = vcvt.s32.f32 %v667
        %v868 = vcvt.s32.f32 %v668
        %v869 = vcvt.s32.f32 %v669
        %v870 = vcvt.s32.f32 %v670
        %vm871 = vcmp.gt.f32.partialorder %v389, 0.0
        %vm872 = vcmp.gt.f32.partialorder %v390, 0.0
        %vm873 = vcmp.gt.f32.partialorder %v391, 0.0
        %vm874 = vcmp.gt.f32.partialorder %v392, 0.0
        %vm875 = vcmp.gt.f32.partialorder %v393, 0.0
        %vm876 = vcmp.gt.f32.partialorder %v394, 0.0
        %vm877 = vcmp.gt.f32.partialorder %v395, 0.0
        %vm878 = vcmp.gt.f32.partialorder %v396, 0.0
        %vm879 = vcmp.gt.f32.partialorder %v397, 0.0
        %vm880 = vcmp.gt.f32.partialorder %v398, 0.0
        %vm881 = vcmp.gt.f32.partialorder %v399, 0.0
        %vm882 = vcmp.gt.f32.partialorder %v400, 0.0
        %vm883 = vcmp.gt.f32.partialorder %v401, 0.0
        %vm884 = vcmp.gt.f32.partialorder %v402, 0.0
        %vm885 = vcmp.gt.f32.partialorder %v403, 0.0
        %vm886 = vcmp.gt.f32.partialorder %v404, 0.0
        %v887 = vsel %vm871, 1, 0
        %v888 = vsel %vm872, 1, 0
        %v889 = vsel %vm873, 1, 0
        %v890 = vsel %vm874, 1, 0
        %v891 = vsel %vm875, 1, 0
        %v892 = vsel %vm876, 1, 0
        %v893 = vsel %vm877, 1, 0
        %v894 = vsel %vm878, 1, 0
        %v895 = vsel %vm879, 1, 0
        %v896 = vsel %vm880, 1, 0
        %v897 = vsel %vm881, 1, 0
        %v898 = vsel %vm882, 1, 0
        %v899 = vsel %vm883, 1, 0
        %v900 = vsel %vm884, 1, 0
        %v901 = vsel %vm885, 1, 0
        %v902 = vsel %vm886, 1, 0
        %903 = vset.pattern.permute.xlu0 0
        %904 = vperm.xlu0 %903, %v887
        %v905 = vpop.permute.xlu0 %904
        %906 = vset.pattern.permute.xlu0 0
        %907 = vperm.xlu0 %906, %v888
        %v908 = vpop.permute.xlu0 %907
        %909 = vset.pattern.permute.xlu0 0
        %910 = vperm.xlu0 %909, %v889
        %v911 = vpop.permute.xlu0 %910
        %912 = vset.pattern.permute.xlu0 0
        %913 = vperm.xlu0 %912, %v890
        %v914 = vpop.permute.xlu0 %913
        %915 = vset.pattern.permute.xlu0 0
        %916 = vperm.xlu0 %915, %v891
        %v917 = vpop.permute.xlu0 %916
        %918 = vset.pattern.permute.xlu0 0
        %919 = vperm.xlu0 %918, %v892
        %v920 = vpop.permute.xlu0 %919
        %921 = vset.pattern.permute.xlu0 0
        %922 = vperm.xlu0 %921, %v893
        %v923 = vpop.permute.xlu0 %922
        %924 = vset.pattern.permute.xlu0 0
        %925 = vperm.xlu0 %924, %v894
        %v926 = vpop.permute.xlu0 %925
        %927 = vset.pattern.permute.xlu0 0
        %928 = vperm.xlu0 %927, %v895
        %v929 = vpop.permute.xlu0 %928
        %930 = vset.pattern.permute.xlu0 0
        %931 = vperm.xlu0 %930, %v896
        %v932 = vpop.permute.xlu0 %931
        %933 = vset.pattern.permute.xlu0 0
        %934 = vperm.xlu0 %933, %v897
        %v935 = vpop.permute.xlu0 %934
        %936 = vset.pattern.permute.xlu0 0
        %937 = vperm.xlu0 %936, %v898
        %v938 = vpop.permute.xlu0 %937
        %939 = vset.pattern.permute.xlu0 0
        %940 = vperm.xlu0 %939, %v899
        %v941 = vpop.permute.xlu0 %940
        %942 = vset.pattern.permute.xlu0 0
        %943 = vperm.xlu0 %942, %v900
        %v944 = vpop.permute.xlu0 %943
        %945 = vset.pattern.permute.xlu0 0
        %946 = vperm.xlu0 %945, %v901
        %v947 = vpop.permute.xlu0 %946
        %948 = vset.pattern.permute.xlu0 0
        %949 = vperm.xlu0 %948, %v902
        %v950 = vpop.permute.xlu0 %949
        %vm951 = vcmp.eq.s32.totalorder %v905, 1
        %vm952 = vcmp.eq.s32.totalorder %v908, 1
        %vm953 = vcmp.eq.s32.totalorder %v911, 1
        %vm954 = vcmp.eq.s32.totalorder %v914, 1
        %vm955 = vcmp.eq.s32.totalorder %v917, 1
        %vm956 = vcmp.eq.s32.totalorder %v920, 1
        %vm957 = vcmp.eq.s32.totalorder %v923, 1
        %vm958 = vcmp.eq.s32.totalorder %v926, 1
        %vm959 = vcmp.eq.s32.totalorder %v929, 1
        %vm960 = vcmp.eq.s32.totalorder %v932, 1
        %vm961 = vcmp.eq.s32.totalorder %v935, 1
        %vm962 = vcmp.eq.s32.totalorder %v938, 1
        %vm963 = vcmp.eq.s32.totalorder %v941, 1
        %vm964 = vcmp.eq.s32.totalorder %v944, 1
        %vm965 = vcmp.eq.s32.totalorder %v947, 1
        %vm966 = vcmp.eq.s32.totalorder %v950, 1
        %v967 = vsel %vm951, %v851, %v867
        %v968 = vsel %vm952, %v852, %v868
        %v969 = vsel %vm953, %v853, %v869
        %v970 = vsel %vm954, %v854, %v870
        %v971 = vsel %vm955, %v855, %v867
        %v972 = vsel %vm956, %v856, %v868
        %v973 = vsel %vm957, %v857, %v869
        %v974 = vsel %vm958, %v858, %v870
        %v975 = vsel %vm959, %v859, %v867
        %v976 = vsel %vm960, %v860, %v868
        %v977 = vsel %vm961, %v861, %v869
        %v978 = vsel %vm962, %v862, %v870
        %v979 = vsel %vm963, %v863, %v867
        %v980 = vsel %vm964, %v864, %v868
        %v981 = vsel %vm965, %v865, %v869
        %v982 = vsel %vm966, %v866, %v870
        %v983 = vpack.c.bf16 %v968, %v967
        %v984 = vpack.c.bf16 %v970, %v969
        %v985 = vpack.c.bf16 %v972, %v971
        %v986 = vpack.c.bf16 %v974, %v973
        %v987 = vpack.c.bf16 %v976, %v975
        %v988 = vpack.c.bf16 %v978, %v977
        %v989 = vpack.c.bf16 %v980, %v979
        %v990 = vpack.c.bf16 %v982, %v981
        %v991 = vld [vmem:[%s308] sm:$0xff]
        %v992 = vld [vmem:[%s308 + $0x8] sm:$0xff]
        %v993 = vld [vmem:[%s308 + $0x10] sm:$0xff]
        %v994 = vld [vmem:[%s308 + $0x18] sm:$0xff]
        %v995 = vld [vmem:[%s308 + $0x20] sm:$0xff]
        %v996 = vld [vmem:[%s308 + $0x28] sm:$0xff]
        %v997 = vld [vmem:[%s308 + $0x30] sm:$0xff]
        %v998 = vld [vmem:[%s308 + $0x38] sm:$0xff]
        %v999 = vld [vmem:[%s308 + $0x40] sm:$0xff]
        %v1000 = vld [vmem:[%s308 + $0x48] sm:$0xff]
        %v1001 = vld [vmem:[%s308 + $0x50] sm:$0xff]
        %v1002 = vld [vmem:[%s308 + $0x58] sm:$0xff]
        %v1003 = vld [vmem:[%s308 + $0x60] sm:$0xff]
        %v1004 = vld [vmem:[%s308 + $0x68] sm:$0xff]
        %v1005 = vld [vmem:[%s308 + $0x70] sm:$0xff]
        %v1006 = vld [vmem:[%s308 + $0x78] sm:$0xff]
        %v1007 = vpack.c.bf16 %v992, %v991
        %v1008 = vpack.c.bf16 %v994, %v993
        %v1009 = vpack.c.bf16 %v996, %v995
        %v1010 = vpack.c.bf16 %v998, %v997
        %v1011 = vpack.c.bf16 %v1000, %v999
        %v1012 = vpack.c.bf16 %v1002, %v1001
        %v1013 = vpack.c.bf16 %v1004, %v1003
        %v1014 = vpack.c.bf16 %v1006, %v1005
        %v1016 = vsel %vm405, %v983, 0
        %v1019 = vsel %vm405, %v984, 0
        %1021 = vmatprep.subr.bf16.mxu0 0
        %1022 = vmatpush1.bf16.msra.mxu0 0
        %1023 = vmatprep.subr.bf16.mxu0 0
        %1024 = vmatpush1.bf16.msra.mxu0 0
        %1025 = vmatprep.subr.bf16.mxu0 0
        %1026 = vmatpush1.bf16.msra.mxu0 0
        %1027 = vmatprep.subr.bf16.mxu0 0
        %1028 = vmatpush1.bf16.msra.mxu0 0
        %1029 = vmatprep.subr.bf16.mxu0 0
        %1030 = vmatpush1.bf16.msra.mxu0 0
        %1031 = vmatprep.subr.bf16.mxu0 0
        %1032 = vmatpush1.bf16.msra.mxu0 0
        %1033 = vmatprep.subr.bf16.mxu0 0
        %1034 = vmatpush1.bf16.msra.mxu0 %v1008
        %1035 = vmatprep.subr.bf16.mxu0 0
        %1036 = vmatpush1.bf16.msra.mxu0 %v1007
        %1037 = vmatprep.subr.bf16.mxu0 0
        %1038 = vmatpush2.bf16.msra.mxu0 0
        %1039 = vmatprep.subr.bf16.mxu0 0
        %1040 = vmatpush2.bf16.msra.mxu0 0
        %1041 = vmatprep.subr.bf16.mxu0 0
        %1042 = vmatpush2.bf16.msra.mxu0 0
        %1043 = vmatprep.subr.bf16.mxu0 0
        %1044 = vmatpush2.bf16.msra.mxu0 0
        %1045 = vmatprep.subr.bf16.mxu0 0
        %1046 = vmatpush2.bf16.msra.mxu0 0
        %1047 = vmatprep.subr.bf16.mxu0 0
        %1048 = vmatpush2.bf16.msra.mxu0 0
        %1049 = vmatprep.subr.bf16.mxu0 0
        %1050 = vmatpush2.bf16.msra.mxu0 0
        %1051 = vmatprep.subr.bf16.mxu0 0
        %1052 = vmatpush2.bf16.msra.mxu0 0
        %1053 = vmatprep.mubr.bf16.mxu0 0
        %1054 = vmatmul.mubr.bf16.gmra.mxu0 %v1016
        %v1055 = vpop.f32.mrf.mxu0
        %v1056 = vadd.f32 0.0, %v1055
        %v1057 = vpop.f32.mrf.mxu0
        %v1058 = vpop.f32.mrf.mxu0
        %v1059 = vadd.f32 0.0, %v1058
        %v1060 = vpop.f32.mrf.mxu0
        %1061 = vmatprep.mubr.bf16.mxu0 0
        %1062 = vmatmul.mubr.bf16.gmra.mxu0 %v1019
        %v1063 = vpop.f32.mrf.mxu0
        %v1064 = vadd.f32 0.0, %v1063
        %v1065 = vpop.f32.mrf.mxu0
        %v1066 = vpop.f32.mrf.mxu0
        %v1067 = vadd.f32 0.0, %v1066
        %v1068 = vpop.f32.mrf.mxu0
        %1069 = vdwg.mxu0
        %v1071 = vsel %vm405, %v985, 0
        %v1074 = vsel %vm405, %v986, 0
        %1076 = vmatprep.subr.bf16.mxu0 0
        %1077 = vmatpush1.bf16.msra.mxu0 0
        %1078 = vmatprep.subr.bf16.mxu0 0
        %1079 = vmatpush1.bf16.msra.mxu0 0
        %1080 = vmatprep.subr.bf16.mxu0 0
        %1081 = vmatpush1.bf16.msra.mxu0 0
        %1082 = vmatprep.subr.bf16.mxu0 0
        %1083 = vmatpush1.bf16.msra.mxu0 0
        %1084 = vmatprep.subr.bf16.mxu0 0
        %1085 = vmatpush1.bf16.msra.mxu0 0
        %1086 = vmatprep.subr.bf16.mxu0 0
        %1087 = vmatpush1.bf16.msra.mxu0 0
        %1088 = vmatprep.subr.bf16.mxu0 0
        %1089 = vmatpush1.bf16.msra.mxu0 %v1010
        %1090 = vmatprep.subr.bf16.mxu0 0
        %1091 = vmatpush1.bf16.msra.mxu0 %v1009
        %1092 = vmatprep.subr.bf16.mxu0 0
        %1093 = vmatpush2.bf16.msra.mxu0 0
        %1094 = vmatprep.subr.bf16.mxu0 0
        %1095 = vmatpush2.bf16.msra.mxu0 0
        %1096 = vmatprep.subr.bf16.mxu0 0
        %1097 = vmatpush2.bf16.msra.mxu0 0
        %1098 = vmatprep.subr.bf16.mxu0 0
        %1099 = vmatpush2.bf16.msra.mxu0 0
        %1100 = vmatprep.subr.bf16.mxu0 0
        %1101 = vmatpush2.bf16.msra.mxu0 0
        %1102 = vmatprep.subr.bf16.mxu0 0
        %1103 = vmatpush2.bf16.msra.mxu0 0
        %1104 = vmatprep.subr.bf16.mxu0 0
        %1105 = vmatpush2.bf16.msra.mxu0 0
        %1106 = vmatprep.subr.bf16.mxu0 0
        %1107 = vmatpush2.bf16.msra.mxu0 0
        %1108 = vmatprep.mubr.bf16.mxu0 0
        %1109 = vmatmul.mubr.bf16.gmra.mxu0 %v1071
        %v1110 = vpop.f32.mrf.mxu0
        %v1111 = vadd.f32 0.0, %v1110
        %v1112 = vpop.f32.mrf.mxu0
        %v1113 = vpop.f32.mrf.mxu0
        %v1114 = vadd.f32 0.0, %v1113
        %v1115 = vpop.f32.mrf.mxu0
        %1116 = vmatprep.mubr.bf16.mxu0 0
        %1117 = vmatmul.mubr.bf16.gmra.mxu0 %v1074
        %v1118 = vpop.f32.mrf.mxu0
        %v1119 = vadd.f32 0.0, %v1118
        %v1120 = vpop.f32.mrf.mxu0
        %v1121 = vpop.f32.mrf.mxu0
        %v1122 = vadd.f32 0.0, %v1121
        %v1123 = vpop.f32.mrf.mxu0
        %1124 = vdwg.mxu0
        %v1126 = vsel %vm405, %v987, 0
        %v1129 = vsel %vm405, %v988, 0
        %1131 = vmatprep.subr.bf16.mxu0 0
        %1132 = vmatpush1.bf16.msra.mxu0 0
        %1133 = vmatprep.subr.bf16.mxu0 0
        %1134 = vmatpush1.bf16.msra.mxu0 0
        %1135 = vmatprep.subr.bf16.mxu0 0
        %1136 = vmatpush1.bf16.msra.mxu0 0
        %1137 = vmatprep.subr.bf16.mxu0 0
        %1138 = vmatpush1.bf16.msra.mxu0 0
        %1139 = vmatprep.subr.bf16.mxu0 0
        %1140 = vmatpush1.bf16.msra.mxu0 0
        %1141 = vmatprep.subr.bf16.mxu0 0
        %1142 = vmatpush1.bf16.msra.mxu0 0
        %1143 = vmatprep.subr.bf16.mxu0 0
        %1144 = vmatpush1.bf16.msra.mxu0 %v1012
        %1145 = vmatprep.subr.bf16.mxu0 0
        %1146 = vmatpush1.bf16.msra.mxu0 %v1011
        %1147 = vmatprep.subr.bf16.mxu0 0
        %1148 = vmatpush2.bf16.msra.mxu0 0
        %1149 = vmatprep.subr.bf16.mxu0 0
        %1150 = vmatpush2.bf16.msra.mxu0 0
        %1151 = vmatprep.subr.bf16.mxu0 0
        %1152 = vmatpush2.bf16.msra.mxu0 0
        %1153 = vmatprep.subr.bf16.mxu0 0
        %1154 = vmatpush2.bf16.msra.mxu0 0
        %1155 = vmatprep.subr.bf16.mxu0 0
        %1156 = vmatpush2.bf16.msra.mxu0 0
        %1157 = vmatprep.subr.bf16.mxu0 0
        %1158 = vmatpush2.bf16.msra.mxu0 0
        %1159 = vmatprep.subr.bf16.mxu0 0
        %1160 = vmatpush2.bf16.msra.mxu0 0
        %1161 = vmatprep.subr.bf16.mxu0 0
        %1162 = vmatpush2.bf16.msra.mxu0 0
        %1163 = vmatprep.mubr.bf16.mxu0 0
        %1164 = vmatmul.mubr.bf16.gmra.mxu0 %v1126
        %v1165 = vpop.f32.mrf.mxu0
        %v1166 = vadd.f32 0.0, %v1165
        %v1167 = vpop.f32.mrf.mxu0
        %v1168 = vpop.f32.mrf.mxu0
        %v1169 = vadd.f32 0.0, %v1168
        %v1170 = vpop.f32.mrf.mxu0
        %1171 = vmatprep.mubr.bf16.mxu0 0
        %1172 = vmatmul.mubr.bf16.gmra.mxu0 %v1129
        %v1173 = vpop.f32.mrf.mxu0
        %v1174 = vadd.f32 0.0, %v1173
        %v1175 = vpop.f32.mrf.mxu0
        %v1176 = vpop.f32.mrf.mxu0
        %v1177 = vadd.f32 0.0, %v1176
        %v1178 = vpop.f32.mrf.mxu0
        %1179 = vdwg.mxu0
        %v1181 = vsel %vm405, %v989, 0
        %v1184 = vsel %vm405, %v990, 0
        %1186 = vmatprep.subr.bf16.mxu0 0
        %1187 = vmatpush1.bf16.msra.mxu0 0
        %1188 = vmatprep.subr.bf16.mxu0 0
        %1189 = vmatpush1.bf16.msra.mxu0 0
        %1190 = vmatprep.subr.bf16.mxu0 0
        %1191 = vmatpush1.bf16.msra.mxu0 0
        %1192 = vmatprep.subr.bf16.mxu0 0
        %1193 = vmatpush1.bf16.msra.mxu0 0
        %1194 = vmatprep.subr.bf16.mxu0 0
        %1195 = vmatpush1.bf16.msra.mxu0 0
        %1196 = vmatprep.subr.bf16.mxu0 0
        %1197 = vmatpush1.bf16.msra.mxu0 0
        %1198 = vmatprep.subr.bf16.mxu0 0
        %1199 = vmatpush1.bf16.msra.mxu0 %v1014
        %1200 = vmatprep.subr.bf16.mxu0 0
        %1201 = vmatpush1.bf16.msra.mxu0 %v1013
        %1202 = vmatprep.subr.bf16.mxu0 0
        %1203 = vmatpush2.bf16.msra.mxu0 0
        %1204 = vmatprep.subr.bf16.mxu0 0
        %1205 = vmatpush2.bf16.msra.mxu0 0
        %1206 = vmatprep.subr.bf16.mxu0 0
        %1207 = vmatpush2.bf16.msra.mxu0 0
        %1208 = vmatprep.subr.bf16.mxu0 0
        %1209 = vmatpush2.bf16.msra.mxu0 0
        %1210 = vmatprep.subr.bf16.mxu0 0
        %1211 = vmatpush2.bf16.msra.mxu0 0
        %1212 = vmatprep.subr.bf16.mxu0 0
        %1213 = vmatpush2.bf16.msra.mxu0 0
        %1214 = vmatprep.subr.bf16.mxu0 0
        %1215 = vmatpush2.bf16.msra.mxu0 0
        %1216 = vmatprep.subr.bf16.mxu0 0
        %1217 = vmatpush2.bf16.msra.mxu0 0
        %1218 = vmatprep.mubr.bf16.mxu0 0
        %1219 = vmatmul.mubr.bf16.gmra.mxu0 %v1181
        %v1220 = vpop.f32.mrf.mxu0
        %v1221 = vadd.f32 0.0, %v1220
        %v1222 = vpop.f32.mrf.mxu0
        %v1223 = vpop.f32.mrf.mxu0
        %v1224 = vadd.f32 0.0, %v1223
        %v1225 = vpop.f32.mrf.mxu0
        %1226 = vmatprep.mubr.bf16.mxu0 0
        %1227 = vmatmul.mubr.bf16.gmra.mxu0 %v1184
        %v1228 = vpop.f32.mrf.mxu0
        %v1229 = vadd.f32 0.0, %v1228
        %v1230 = vpop.f32.mrf.mxu0
        %v1231 = vpop.f32.mrf.mxu0
        %v1232 = vadd.f32 0.0, %v1231
        %v1233 = vpop.f32.mrf.mxu0
        %1234 = vdwg.mxu0
        %1235 = vst.msk [vmem:[%s283] sm:$0xff] %vm405, %v1056
        %1236 = vst.msk [vmem:[%s283 + $0x8] sm:$0xff] %vm405, %v1059
        %1237 = vst.msk [vmem:[%s283 + $0x10] sm:$0xff] %vm405, %v1064
        %1238 = vst.msk [vmem:[%s283 + $0x18] sm:$0xff] %vm405, %v1067
        %1239 = vst.msk [vmem:[%s283 + $0x20] sm:$0xff] %vm405, %v1111
        %1240 = vst.msk [vmem:[%s283 + $0x28] sm:$0xff] %vm405, %v1114
        %1241 = vst.msk [vmem:[%s283 + $0x30] sm:$0xff] %vm405, %v1119
        %1242 = vst.msk [vmem:[%s283 + $0x38] sm:$0xff] %vm405, %v1122
        %1243 = vst.msk [vmem:[%s283 + $0x40] sm:$0xff] %vm405, %v1166
        %1244 = vst.msk [vmem:[%s283 + $0x48] sm:$0xff] %vm405, %v1169
        %1245 = vst.msk [vmem:[%s283 + $0x50] sm:$0xff] %vm405, %v1174
        %1246 = vst.msk [vmem:[%s283 + $0x58] sm:$0xff] %vm405, %v1177
        %1247 = vst.msk [vmem:[%s283 + $0x60] sm:$0xff] %vm405, %v1221
        %1248 = vst.msk [vmem:[%s283 + $0x68] sm:$0xff] %vm405, %v1224
        %1249 = vst.msk [vmem:[%s283 + $0x70] sm:$0xff] %vm405, %v1229
        %1250 = vst.msk [vmem:[%s283 + $0x78] sm:$0xff] %vm405, %v1232
        %s1251 = sand.u32 %s148, 1
        %s1252 = scalar_lea.sflag [#allocation3], %s1251
        %s1253 = sand.u32 %s148, 1
        %s1254 = smul.addr %s1253, 128
        %s1255 = scalar_lea.vmem [#allocation2], %s1254
        // Predicated region
        $region37: #{prob_attention.1} parent=35 // pred_check
          %p1256 = pneg %p158
        $region38: #{prob_attention.1} parent=35 // pred_check_branch
          %1258 = sbr.rel (%p1256) target = $region40
        $region39: #{prob_attention.1} parent=35 // pred_region
          %s1259 = smul.u32 4, %s22
          %s1260 = smul.u32 4, %s23
          %s1262 = ssub.s32 2048, 2048
          %1263 = vsyncadd %s1252, %s1262
          %s1264 = smul.addr %s1259, 4
          %s1265 = sadd.s32 %s1260, %s1264
          %s1266 = smul.addr %s1265, 128
          %s1267 = scalar_lea.hbm %s4, %s1266
          %s1268 = sshll.u32 %s1255, 4
          %s1269 = int_to_ptr.vmem [resolvable:$true] %s1268
          %1274 = dma.vmem_to_hbm [thread:$0]  %s1269, 2048, %s1267, %s1252, 128, 128, 8
        $region40: #{prob_attention.1} parent=35 // pred_fallthru
          _
      $region36: #{prob_attention.1} parent=5 // pred_fallthru
        _
      %p1275 = scmp.le.s32.totalorder 2, %s13
      // Predicated region
      $region41: #{prob_attention.1} parent=5 // pred_check
        %p1276 = pneg %p1275
      $region42: #{prob_attention.1} parent=5 // pred_check_branch
        %1278 = sbr.rel (%p1276) target = $region44
      $region43: #{prob_attention.1} parent=5 // pred_region
        %s1279 = ssub.s32 %s13, 2
        // Predicated region
        $region45: #{prob_attention.1} parent=43 // pred_check
          %p1280 = pneg %p164
        $region46: #{prob_attention.1} parent=43 // pred_check_branch
          %1282 = sbr.rel (%p1280) target = $region48
        $region47: #{prob_attention.1} parent=43 // pred_region
          %s1283 = sand.u32 %s149, 1
          %s1284 = scalar_lea.sflag [#allocation3], %s1283
          %s1285 = sand.u32 %s149, 1
          %s1286 = smul.addr %s1285, 128
          %s1287 = scalar_lea.vmem [#allocation2], %s1286
          %1288 = dma.done %s1284, 2048
        $region48: #{prob_attention.1} parent=43 // pred_fallthru
          _
      $region44: #{prob_attention.1} parent=5 // pred_fallthru
        _
    $region6: #{prob_attention.1} parent=1 // loop_footer
      %s17 = sadd.s32 1, %s13
    $region7: #{prob_attention.1} parent=1 // loop_footer_branch
      %12 = sbr.rel target = $region3
    $region8: #{prob_attention.1} parent=1 // loop_exit
      _
    %1289 = vsyncpa [#allocation3], 1
    %s1290 = scalar_lea.sflag [#allocation3], 1
    %1291 = vsyncpa %s1290, 1

</llo_original>
